<compile_context>
chip_gen: v6e
topology: v6e:2x2x1
jax: 0.10.0
libtpu: 0.0.40
codegen_flags: <defaults>
</compile_context>

<pallas_src>
import math

import jax
import jax.numpy as jnp
from jax import lax
from jax.experimental import pallas as pl
from jax.experimental.pallas import tpu as pltpu

F32 = jnp.float32


# ----------------------------- kernel -----------------------------
def _graph_conv_kernel(x_ref, adj_ref, w_ref, b_ref, out_ref):
    # x_ref   : (1, L, D)  one batch element of `input`
    # adj_ref : (1, L, L)  one batch element of `adj`
    # w_ref   : (D, D)     full weight (shared across grid steps)
    # b_ref   : (1, D)     bias
    _, L, D = x_ref.shape

    x = x_ref[0]                     # (L, D)
    adj = adj_ref[0]                 # (L, L)
    w = w_ref[...]                   # (D, D)
    bias = b_ref[...]                # (1, D)

    # diag(weight) -> (1, D): mask with a 2-D iota and reduce over sublanes (XLU).
    ii = lax.broadcasted_iota(jnp.int32, (D, D), 0)
    jj = lax.broadcasted_iota(jnp.int32, (D, D), 1)
    w_diag = jnp.sum(jnp.where(ii == jj, w, 0.0), axis=0, keepdims=True)      # (1, D)

    # diag(adj[b]) -> (L, 1): mask and reduce over lanes.
    ri = lax.broadcasted_iota(jnp.int32, (L, L), 0)
    ci = lax.broadcasted_iota(jnp.int32, (L, L), 1)
    adj_diag = jnp.sum(jnp.where(ri == ci, adj, 0.0), axis=1, keepdims=True)  # (L, 1)

    # einsum('blh,hh->blh') then einsum('bll,blh->blh') + bias   (diagonal semantics)
    out_ref[0] = adj_diag * (x * w_diag) + bias


# ----------------------------- wrapper -----------------------------
@jax.jit
def graph_convolution(x, adj, weight, bias):
    """x: (B, L, D) f32, adj: (B, L, L) f32, weight: (D, D) f32, bias: (D,) f32."""
    B, L, D = x.shape
    bias2d = bias.reshape(1, D)
    return pl.pallas_call(
        _graph_conv_kernel,
        out_shape=jax.ShapeDtypeStruct((B, L, D), x.dtype),
        grid=(B,),
        in_specs=[
            pl.BlockSpec((1, L, D), lambda b: (b, 0, 0)),
            pl.BlockSpec((1, L, L), lambda b: (b, 0, 0)),
            pl.BlockSpec((D, D), lambda b: (0, 0)),
            pl.BlockSpec((1, D), lambda b: (0, 0)),
        ],
        out_specs=pl.BlockSpec((1, L, D), lambda b: (b, 0, 0)),
        compiler_params=pltpu.CompilerParams(dimension_semantics=("parallel",)),
    )(x, adj, weight, bias2d)


# ----------------------------- main -----------------------------
if __name__ == "__main__":
    B, L, D = 2, 8, 128          # batch, node-sequence length, in_features == out_features

    key = jax.random.PRNGKey(0)
    kx, ka, kw, kb = jax.random.split(key, 4)

    # Module parameters (reset_parameters: uniform(-stdv, stdv), stdv = 1/sqrt(out_features))
    stdv = 1.0 / math.sqrt(D)
    weight = jax.random.uniform(kw, (D, D), F32, -stdv, stdv)
    bias = jax.random.uniform(kb, (D,), F32, -stdv, stdv)

    # Inputs
    x = jax.random.normal(kx, (B, L, D), F32)
    adj = jax.random.uniform(ka, (B, L, L), F32)

    out = graph_convolution(x, adj, weight, bias)
    out = jax.block_until_ready(out)

    # Plain-JAX reference with the exact same diagonal-einsum semantics as the PyTorch module.
    w_diag = jnp.diagonal(weight)                       # 'hh' -> diag(weight)
    adj_diag = jnp.diagonal(adj, axis1=1, axis2=2)      # 'bll' -> per-batch diag(adj)
    ref = adj_diag[:, :, None] * (x * w_diag[None, None, :]) + bias[None, None, :]

    assert out.shape == (B, L, D)
    assert jnp.allclose(out, ref, atol=1e-5, rtol=1e-5), "Pallas GCN mismatch vs reference"
    print("KERNEL_OK")
</pallas_src>

<mosaic_0001>
module attributes {stable_mosaic.version = 11 : i64} {
  func.func @_graph_conv_kernel(%arg0: i32, %arg1: memref<1x8x128xf32, #tpu.memory_space<vmem>>, %arg2: memref<1x8x8xf32, #tpu.memory_space<vmem>>, %arg3: memref<128x128xf32, #tpu.memory_space<vmem>>, %arg4: memref<1x128xf32, #tpu.memory_space<vmem>>, %arg5: memref<1x8x128xf32, #tpu.memory_space<vmem>>) attributes {dimension_semantics = [#tpu.dimension_semantics<parallel>], iteration_bounds = array<i64: 2>, scalar_prefetch = 0 : i64, scratch_operands = 0 : i64, tpu.core_type = #tpu.core_type<tc>, window_params = [{transform_indices = @transform_0, window_bounds = array<i64: 1, 8, 128>}, {transform_indices = @transform_1, window_bounds = array<i64: 1, 8, 8>}, {pipeline_mode = #tpu.pipeline_mode<synchronous>, transform_indices = @transform_2, window_bounds = array<i64: 128, 128>}, {pipeline_mode = #tpu.pipeline_mode<synchronous>, transform_indices = @transform_3, window_bounds = array<i64: 1, 128>}, {transform_indices = @transform_4, window_bounds = array<i64: 1, 8, 128>}]} {
    %c0 = arith.constant 0 : index
    %c0_0 = arith.constant 0 : index
    %c0_1 = arith.constant 0 : index
    %0 = vector.load %arg1[%c0, %c0_0, %c0_1] : memref<1x8x128xf32, #tpu.memory_space<vmem>>, vector<1x8x128xf32>
    %1 = vector.shape_cast %0 : vector<1x8x128xf32> to vector<8x128xf32>
    %c0_2 = arith.constant 0 : index
    %c0_3 = arith.constant 0 : index
    %c0_4 = arith.constant 0 : index
    %2 = vector.load %arg2[%c0_2, %c0_3, %c0_4] : memref<1x8x8xf32, #tpu.memory_space<vmem>>, vector<1x8x8xf32>
    %3 = vector.shape_cast %2 : vector<1x8x8xf32> to vector<8x8xf32>
    %c0_5 = arith.constant 0 : index
    %c0_6 = arith.constant 0 : index
    %4 = vector.load %arg3[%c0_5, %c0_6] : memref<128x128xf32, #tpu.memory_space<vmem>>, vector<128x128xf32>
    %c0_7 = arith.constant 0 : index
    %c0_8 = arith.constant 0 : index
    %5 = vector.load %arg4[%c0_7, %c0_8] : memref<1x128xf32, #tpu.memory_space<vmem>>, vector<1x128xf32>
    %6 = tpu.iota {dimensions = array<i32: 0>} : vector<128x128xi32>
    %7 = tpu.iota {dimensions = array<i32: 1>} : vector<128x128xi32>
    %8 = arith.cmpi eq, %6, %7 : vector<128x128xi32>
    %cst = arith.constant 0.000000e+00 : f32
    %9 = vector.broadcast %cst : f32 to vector<128x128xf32>
    %10 = arith.select %8, %4, %9 : vector<128x128xi1>, vector<128x128xf32>
    %cst_9 = arith.constant dense<0.000000e+00> : vector<128xf32>
    %11 = vector.multi_reduction <add>, %10, %cst_9 [0] : vector<128x128xf32> to vector<128xf32>
    %12 = vector.shape_cast %11 : vector<128xf32> to vector<1x128xf32>
    %13 = tpu.iota {dimensions = array<i32: 0>} : vector<8x8xi32>
    %14 = tpu.iota {dimensions = array<i32: 1>} : vector<8x8xi32>
    %15 = arith.cmpi eq, %13, %14 : vector<8x8xi32>
    %cst_10 = arith.constant 0.000000e+00 : f32
    %16 = vector.broadcast %cst_10 : f32 to vector<8x8xf32>
    %17 = arith.select %15, %3, %16 : vector<8x8xi1>, vector<8x8xf32>
    %cst_11 = arith.constant dense<0.000000e+00> : vector<8xf32>
    %18 = vector.multi_reduction <add>, %17, %cst_11 [1] : vector<8x8xf32> to vector<8xf32>
    %19 = vector.shape_cast %18 : vector<8xf32> to vector<8x1xf32>
    %20 = vector.broadcast %12 : vector<1x128xf32> to vector<8x128xf32>
    %21 = arith.mulf %1, %20 : vector<8x128xf32>
    %22 = vector.broadcast %19 : vector<8x1xf32> to vector<8x128xf32>
    %23 = arith.mulf %22, %21 : vector<8x128xf32>
    %24 = vector.broadcast %5 : vector<1x128xf32> to vector<8x128xf32>
    %25 = arith.addf %23, %24 : vector<8x128xf32>
    %c0_12 = arith.constant 0 : index
    %c0_13 = arith.constant 0 : index
    %c0_14 = arith.constant 0 : index
    %26 = vector.load %arg5[%c0_12, %c0_13, %c0_14] : memref<1x8x128xf32, #tpu.memory_space<vmem>>, vector<1x8x128xf32>
    %27 = vector.shape_cast %26 : vector<1x8x128xf32> to vector<8x128xf32>
    %28 = vector.shape_cast %25 : vector<8x128xf32> to vector<1x8x128xf32>
    tpu.vector_store %arg5[%c0_12, %c0_13, %c0_14], %28 {strides = array<i32>} : memref<1x8x128xf32, #tpu.memory_space<vmem>>, vector<1x8x128xf32>,
    return
  }
  func.func @transform_0(%arg0: i32) -> (i32, i32, i32) {
    %c0_i32 = arith.constant 0 : i32
    %c0_i32_0 = arith.constant 0 : i32
    %c0_i32_1 = arith.constant 0 : i32
    return %arg0, %c0_i32, %c0_i32_0 : i32, i32, i32
  }
  func.func @transform_1(%arg0: i32) -> (i32, i32, i32) {
    %c0_i32 = arith.constant 0 : i32
    %c0_i32_0 = arith.constant 0 : i32
    %c0_i32_1 = arith.constant 0 : i32
    return %arg0, %c0_i32, %c0_i32_0 : i32, i32, i32
  }
  func.func @transform_2(%arg0: i32) -> (i32, i32) {
    %c0_i32 = arith.constant 0 : i32
    %c0_i32_0 = arith.constant 0 : i32
    %c0_i32_1 = arith.constant 0 : i32
    return %c0_i32, %c0_i32_0 : i32, i32
  }
  func.func @transform_3(%arg0: i32) -> (i32, i32) {
    %c0_i32 = arith.constant 0 : i32
    %c0_i32_0 = arith.constant 0 : i32
    %c0_i32_1 = arith.constant 0 : i32
    return %c0_i32, %c0_i32_0 : i32, i32
  }
  func.func @transform_4(%arg0: i32) -> (i32, i32, i32) {
    %c0_i32 = arith.constant 0 : i32
    %c0_i32_0 = arith.constant 0 : i32
    %c0_i32_1 = arith.constant 0 : i32
    return %arg0, %c0_i32, %c0_i32_0 : i32, i32, i32
  }
}

</mosaic_0001>

<llo_original>
// kernel: graph_convolution.1
$region0: #{graph_convolution.1}
  #allocation0 [shape = 'u32[]', space=smem, size = 0x4, offset = 0x4, fixed_abs, tag = 'smem constant byte address 0x4 - core index']
  #allocation1 [shape = 'u32[144,128]{1,0:T(1,128)}', space=vmem, size = 0x12000, scoped, tag = 'internal scratch']
  %s0 = inlined_call_operand.hbm [shape: f32[2,8,128], index: 0, kind: input, shape index: {}]
  %s1 = inlined_call_operand.hbm [shape: f32[2,8,8], index: 1, kind: input, shape index: {}]
  %s2 = inlined_call_operand.hbm [shape: f32[128,128], index: 2, kind: input, shape index: {}]
  %s3 = inlined_call_operand.vmem [shape: f32[1,128], index: 3, kind: input, shape index: {}]
  %s4 = inlined_call_operand.hbm [shape: f32[2,8,128], index: 4, kind: output, shape index: {}]
  %s5 = sld [smem:[#allocation0]]
  $region61: #{graph_convolution.1} parent=0
    _
  %s7 = ssub.s32 1, %s5
  %s8 = scalar_select 0, %s7, %s5
  $region1: #{graph_convolution.1} parent=0
    #allocation2 [shape = 'u8[8192]{0}', space=vmem, size = 0x2000, scoped, tag = 'input window, operand 0']
    #allocation3 [shape = 's32[2]{0}', space=sflag, size = 0x8, scoped, tag = 'scoped memory for graph_convolution.1']
    #allocation4 [shape = 's32[2]{0}', space=sflag, size = 0x8, scoped, tag = 'scoped memory for graph_convolution.1']
    #allocation5 [shape = 'u8[8192]{0}', space=vmem, size = 0x2000, scoped, tag = 'input window, operand 1']
    #allocation6 [shape = 's32[2]{0}', space=sflag, size = 0x8, scoped, tag = 'scoped memory for graph_convolution.1']
    #allocation7 [shape = 'u8[65536]{0}', space=vmem, size = 0x10000, scoped, tag = 'input window, operand 2, single buffered']
    #allocation8 [shape = 'u8[8192]{0}', space=vmem, size = 0x2000, scoped, tag = 'output window, operand 0']
    %9 = vsyncpa [#allocation3], 0
    %s10 = scalar_lea.sflag [#allocation3], 1
    %11 = vsyncpa %s10, 0
    %12 = vsyncpa [#allocation6], 0
    %s13 = scalar_lea.sflag [#allocation6], 1
    %14 = vsyncpa %s13, 0
    %15 = vsyncpa [#allocation4], 0
    %s16 = scalar_lea.sflag [#allocation4], 1
    %17 = vsyncpa %s16, 0
    loop: start=0, step=1, limit=4
    $region2: #{graph_convolution.1} parent=1 // loop_pre_header
      _
    $region3: #{graph_convolution.1} parent=1 // loop_header
      %s19 = sphi 0, %s23
      %p20 = scmp.ge.s32.totalorder %s19, 4
      %s29 = sphi 0, %s31
      %s32 = sphi 0, %s29
      %s33 = sphi 0, %s32
      %s49 = sphi 0, %s33
      %s55 = sphi 0, %s57
      %s58 = sphi 0, %s55
      %s59 = sphi 0, %s58
      %s75 = sphi 0, %s59
      %s79 = sphi 0, %s79
      %s81 = sphi 0, %s79
      %s82 = sphi 0, %s81
      %s96 = sphi 0, %s82
      %s100 = sphi 0, %s100
      %s102 = sphi 0, %s100
      %s103 = sphi 0, %s102
      %s117 = sphi 0, %s103
      %s123 = sphi 0, %s125
      %s126 = sphi 0, %s123
      %s127 = sphi 0, %s126
      %s143 = sphi 0, %s127
    $region4: #{graph_convolution.1} parent=1 // loop_header_branch
      %22 = sbr.rel (%p20) target = $region8
    $region5: #{graph_convolution.1} parent=1 // loop_body
      %s24 = ssub.s32 %s19, 1
      %s25 = ssub.s32 %s19, 2
      %s26 = sadd.s32 %s19, 1
      %s27 = ssub.s32 %s19, %s26
      %p28 = scmp.eq.s32.totalorder %s27, 0
      %s30 = sadd.s32 %s29, 1
      %s31 = scalar_select %p28, %s29, %s30
      %p34 = pneg %p28
      %p35 = scmp.eq.s32.totalorder %s19, 1
      %p36 = por %p34, %p35
      %p37 = scmp.ne.s32.totalorder %s29, %s32
      %p38 = scmp.eq.s32.totalorder %s19, 0
      %p39 = por %p37, %p38
      %p40 = scmp.ne.s32.totalorder %s29, %s32
      %p41 = scmp.eq.s32.totalorder %s24, 1
      %p42 = por %p40, %p41
      %p43 = scmp.ne.s32.totalorder %s32, %s33
      %p44 = scmp.eq.s32.totalorder %s24, 0
      %p45 = por %p43, %p44
      %p46 = scmp.ne.s32.totalorder %s32, %s33
      %p47 = scmp.eq.s32.totalorder %s25, 1
      %p48 = por %p46, %p47
      %p50 = scmp.ne.s32.totalorder %s33, %s49
      %p51 = scmp.eq.s32.totalorder %s25, 0
      %p52 = por %p50, %p51
      %s53 = ssub.s32 %s19, %s26
      %p54 = scmp.eq.s32.totalorder %s53, 0
      %s56 = sadd.s32 %s55, 1
      %s57 = scalar_select %p54, %s55, %s56
      %p60 = pneg %p54
      %p61 = scmp.eq.s32.totalorder %s19, 1
      %p62 = por %p60, %p61
      %p63 = scmp.ne.s32.totalorder %s55, %s58
      %p64 = scmp.eq.s32.totalorder %s19, 0
      %p65 = por %p63, %p64
      %p66 = scmp.ne.s32.totalorder %s55, %s58
      %p67 = scmp.eq.s32.totalorder %s24, 1
      %p68 = por %p66, %p67
      %p69 = scmp.ne.s32.totalorder %s58, %s59
      %p70 = scmp.eq.s32.totalorder %s24, 0
      %p71 = por %p69, %p70
      %p72 = scmp.ne.s32.totalorder %s58, %s59
      %p73 = scmp.eq.s32.totalorder %s25, 1
      %p74 = por %p72, %p73
      %p76 = scmp.ne.s32.totalorder %s59, %s75
      %p77 = scmp.eq.s32.totalorder %s25, 0
      %p78 = por %p76, %p77
      %s80 = sadd.s32 %s79, 1
      %p83 = scmp.eq.s32.totalorder %s19, 1
      %p84 = scmp.ne.s32.totalorder %s79, %s81
      %p85 = scmp.eq.s32.totalorder %s19, 0
      %p86 = por %p84, %p85
      %p87 = scmp.ne.s32.totalorder %s79, %s81
      %p88 = scmp.eq.s32.totalorder %s24, 1
      %p89 = por %p87, %p88
      %p90 = scmp.ne.s32.totalorder %s81, %s82
      %p91 = scmp.eq.s32.totalorder %s24, 0
      %p92 = por %p90, %p91
      %p93 = scmp.ne.s32.totalorder %s81, %s82
      %p94 = scmp.eq.s32.totalorder %s25, 1
      %p95 = por %p93, %p94
      %p97 = scmp.ne.s32.totalorder %s82, %s96
      %p98 = scmp.eq.s32.totalorder %s25, 0
      %p99 = por %p97, %p98
      %s101 = sadd.s32 %s100, 1
      %p104 = scmp.eq.s32.totalorder %s19, 1
      %p105 = scmp.ne.s32.totalorder %s100, %s102
      %p106 = scmp.eq.s32.totalorder %s19, 0
      %p107 = por %p105, %p106
      %p108 = scmp.ne.s32.totalorder %s100, %s102
      %p109 = scmp.eq.s32.totalorder %s24, 1
      %p110 = por %p108, %p109
      %p111 = scmp.ne.s32.totalorder %s102, %s103
      %p112 = scmp.eq.s32.totalorder %s24, 0
      %p113 = por %p111, %p112
      %p114 = scmp.ne.s32.totalorder %s102, %s103
      %p115 = scmp.eq.s32.totalorder %s25, 1
      %p116 = por %p114, %p115
      %p118 = scmp.ne.s32.totalorder %s103, %s117
      %p119 = scmp.eq.s32.totalorder %s25, 0
      %p120 = por %p118, %p119
      %s121 = ssub.s32 %s19, %s26
      %p122 = scmp.eq.s32.totalorder %s121, 0
      %s124 = sadd.s32 %s123, 1
      %s125 = scalar_select %p122, %s123, %s124
      %p128 = pneg %p122
      %p129 = scmp.eq.s32.totalorder %s19, 1
      %p130 = por %p128, %p129
      %p131 = scmp.ne.s32.totalorder %s123, %s126
      %p132 = scmp.eq.s32.totalorder %s19, 0
      %p133 = por %p131, %p132
      %p134 = scmp.ne.s32.totalorder %s123, %s126
      %p135 = scmp.eq.s32.totalorder %s24, 1
      %p136 = por %p134, %p135
      %p137 = scmp.ne.s32.totalorder %s126, %s127
      %p138 = scmp.eq.s32.totalorder %s24, 0
      %p139 = por %p137, %p138
      %p140 = scmp.ne.s32.totalorder %s126, %s127
      %p141 = scmp.eq.s32.totalorder %s25, 1
      %p142 = por %p140, %p141
      %p144 = scmp.ne.s32.totalorder %s127, %s143
      %p145 = scmp.eq.s32.totalorder %s25, 0
      %p146 = por %p144, %p145
      %p147 = scmp.le.s32.totalorder 1, %s19
      %p148 = scmp.lt.s32.totalorder %s19, 3
      %p149 = pnand %p147, %p148
      %p150 = pneg %p149
      // Predicated region
      $region9: #{graph_convolution.1} parent=5 // pred_check
        _
      $region10: #{graph_convolution.1} parent=5 // pred_check_branch
        %152 = sbr.rel (%p149) target = $region12
      $region11: #{graph_convolution.1} parent=5 // pred_region
        %s153 = ssub.s32 %s19, 1
        // Predicated region
        $region13: #{graph_convolution.1} parent=11 // pred_check
          %p154 = pneg %p92
        $region14: #{graph_convolution.1} parent=11 // pred_check_branch
          %156 = sbr.rel (%p154) target = $region16
        $region15: #{graph_convolution.1} parent=11 // pred_region
          %s158 = ssub.s32 2048, 2048
          %159 = vsyncadd [#allocation6], %s158
          %s160 = sshll.u32 [#allocation7], 4
          %s161 = int_to_ptr.vmem [resolvable:$true] %s160
          %166 = dma.hbm_to_vmem [thread:$0]  %s2, 2048, %s161, [#allocation6], 128, 128, 8
        $region16: #{graph_convolution.1} parent=11 // pred_fallthru
          _
        // Predicated region
        $region17: #{graph_convolution.1} parent=11 // pred_check
          %p167 = pneg %p113
        $region18: #{graph_convolution.1} parent=11 // pred_check_branch
          %169 = sbr.rel (%p167) target = $region20
        $region19: #{graph_convolution.1} parent=11 // pred_region
          _
        $region20: #{graph_convolution.1} parent=11 // pred_fallthru
          _
      $region12: #{graph_convolution.1} parent=5 // pred_fallthru
        _
      %p170 = scmp.lt.s32.totalorder %s19, 2
      // Predicated region
      $region21: #{graph_convolution.1} parent=5 // pred_check
        %p171 = pneg %p170
      $region22: #{graph_convolution.1} parent=5 // pred_check_branch
        %173 = sbr.rel (%p171) target = $region24
      $region23: #{graph_convolution.1} parent=5 // pred_region
        // Predicated region
        $region25: #{graph_convolution.1} parent=23 // pred_check
          %p174 = pneg %p39
        $region26: #{graph_convolution.1} parent=23 // pred_check_branch
          %176 = sbr.rel (%p174) target = $region28
        $region27: #{graph_convolution.1} parent=23 // pred_region
          %s177 = sand.u32 %s29, 1
          %s178 = scalar_lea.sflag [#allocation3], %s177
          %s179 = sand.u32 %s29, 1
          %s180 = smul.addr %s179, 8
          %s181 = scalar_lea.vmem [#allocation2], %s180
          %s183 = ssub.s32 128, 128
          %184 = vsyncadd %s178, %s183
          %s185 = smul.addr %s19, 128
          %s186 = scalar_lea.hbm %s0, %s185
          %s188 = sshll.u32 %s181, 4
          %s189 = int_to_ptr.vmem [resolvable:$true] %s188
          %191 = dma.hbm_to_vmem [thread:$0]  %s186, 128, %s189, %s178
        $region28: #{graph_convolution.1} parent=23 // pred_fallthru
          _
        // Predicated region
        $region29: #{graph_convolution.1} parent=23 // pred_check
          %p192 = pneg %p65
        $region30: #{graph_convolution.1} parent=23 // pred_check_branch
          %194 = sbr.rel (%p192) target = $region32
        $region31: #{graph_convolution.1} parent=23 // pred_region
          %s195 = sand.u32 %s19, 1
          %s196 = scalar_lea.sflag [#allocation6], %s195
          %s197 = sand.u32 %s55, 1
          %s198 = smul.addr %s197, 8
          %s199 = scalar_lea.vmem [#allocation5], %s198
          %s201 = ssub.s32 128, 128
          %202 = vsyncadd %s196, %s201
          %s203 = smul.addr %s19, 128
          %s204 = scalar_lea.hbm %s1, %s203
          %s206 = sshll.u32 %s199, 4
          %s207 = int_to_ptr.vmem [resolvable:$true] %s206
          %209 = dma.hbm_to_vmem [thread:$0]  %s204, 128, %s207, %s196
        $region32: #{graph_convolution.1} parent=23 // pred_fallthru
          _
      $region24: #{graph_convolution.1} parent=5 // pred_fallthru
        _
      %p210 = scmp.le.s32.totalorder 1, %s19
      %p211 = scmp.lt.s32.totalorder %s19, 3
      %p212 = pnand %p210, %p211
      %p213 = pneg %p212
      // Predicated region
      $region33: #{graph_convolution.1} parent=5 // pred_check
        _
      $region34: #{graph_convolution.1} parent=5 // pred_check_branch
        %215 = sbr.rel (%p212) target = $region36
      $region35: #{graph_convolution.1} parent=5 // pred_region
        %s216 = ssub.s32 %s19, 1
        %s217 = sand.u32 %s32, 1
        %s218 = scalar_lea.sflag [#allocation3], %s217
        %s219 = sand.u32 %s32, 1
        %s220 = smul.addr %s219, 8
        %s221 = scalar_lea.vmem [#allocation2], %s220
        // Predicated region
        $region37: #{graph_convolution.1} parent=35 // pred_check
          %p222 = pneg %p45
        $region38: #{graph_convolution.1} parent=35 // pred_check_branch
          %224 = sbr.rel (%p222) target = $region40
        $region39: #{graph_convolution.1} parent=35 // pred_region
          %225 = dma.done %s218, 128
        $region40: #{graph_convolution.1} parent=35 // pred_fallthru
          _
        %s226 = sand.u32 %s24, 1
        %s227 = scalar_lea.sflag [#allocation6], %s226
        %s228 = sand.u32 %s58, 1
        %s229 = smul.addr %s228, 8
        %s230 = scalar_lea.vmem [#allocation5], %s229
        // Predicated region
        $region41: #{graph_convolution.1} parent=35 // pred_check
          %p231 = pneg %p71
        $region42: #{graph_convolution.1} parent=35 // pred_check_branch
          %233 = sbr.rel (%p231) target = $region44
        $region43: #{graph_convolution.1} parent=35 // pred_region
          %234 = dma.done %s227, 128
        $region44: #{graph_convolution.1} parent=35 // pred_fallthru
          _
        // Predicated region
        $region45: #{graph_convolution.1} parent=35 // pred_check
          %p235 = pneg %p92
        $region46: #{graph_convolution.1} parent=35 // pred_check_branch
          %237 = sbr.rel (%p235) target = $region48
        $region47: #{graph_convolution.1} parent=35 // pred_region
          %238 = dma.done [#allocation6], 2048
        $region48: #{graph_convolution.1} parent=35 // pred_fallthru
          _
        %s239 = sand.u32 %s32, 1
        %s240 = scalar_lea.sflag [#allocation3], %s239
        %s241 = sand.u32 %s32, 1
        %s242 = smul.addr %s241, 8
        %s243 = scalar_lea.vmem [#allocation2], %s242
        %p244 = pneg %p45
        %p245 = pneg %p42
        %s246 = sand.u32 %s24, 1
        %s247 = scalar_lea.sflag [#allocation6], %s246
        %s248 = sand.u32 %s58, 1
        %s249 = smul.addr %s248, 8
        %s250 = scalar_lea.vmem [#allocation5], %s249
        %p251 = pneg %p71
        %p252 = pneg %p68
        %p253 = pneg %p92
        %p254 = pneg %p89
        %p255 = pneg %p113
        %p256 = pneg %p110
        %p257 = pneg %p139
        %p258 = pneg %p136
        %s259 = sand.u32 %s126, 1
        %s260 = scalar_lea.sflag [#allocation4], %s259
        %s261 = sand.u32 %s126, 1
        %s262 = smul.addr %s261, 8
        %s263 = scalar_lea.vmem [#allocation8], %s262
        %v264 = vld [vmem:[%s221] sm:$0xff]
        %v265 = vld [vmem:[%s230] sm:$0xff]
        %v266 = vld [vmem:[#allocation7] sm:$0xff]
        %v267 = vld [vmem:[#allocation7 + $0x8] sm:$0xff]
        %v268 = vld [vmem:[#allocation7 + $0x10] sm:$0xff]
        %v269 = vld [vmem:[#allocation7 + $0x18] sm:$0xff]
        %v270 = vld [vmem:[#allocation7 + $0x20] sm:$0xff]
        %v271 = vld [vmem:[#allocation7 + $0x28] sm:$0xff]
        %v272 = vld [vmem:[#allocation7 + $0x30] sm:$0xff]
        %v273 = vld [vmem:[#allocation7 + $0x38] sm:$0xff]
        %v274 = vld [vmem:[#allocation7 + $0x40] sm:$0xff]
        %v275 = vld [vmem:[#allocation7 + $0x48] sm:$0xff]
        %v276 = vld [vmem:[#allocation7 + $0x50] sm:$0xff]
        %v277 = vld [vmem:[#allocation7 + $0x58] sm:$0xff]
        %v278 = vld [vmem:[#allocation7 + $0x60] sm:$0xff]
        %v279 = vld [vmem:[#allocation7 + $0x68] sm:$0xff]
        %v280 = vld [vmem:[#allocation7 + $0x70] sm:$0xff]
        %v281 = vld [vmem:[#allocation7 + $0x78] sm:$0xff]
        %v282 = vld [vmem:[%s3] sm:$0x1]
        %v283 = vlaneseq
        %v284 = vshrl.u32 %v283, 7
        %v285 = vadd.s32 %v284, 8
        %v286 = vadd.s32 %v284, 16
        %v287 = vadd.s32 %v284, 24
        %v288 = vadd.s32 %v284, 32
        %v289 = vadd.s32 %v284, 40
        %v290 = vadd.s32 %v284, 48
        %v291 = vadd.s32 %v284, 56
        %v292 = vadd.s32 %v284, 64
        %v293 = vadd.s32 %v284, 72
        %v294 = vadd.s32 %v284, 80
        %v295 = vadd.s32 %v284, 88
        %v296 = vadd.s32 %v284, 96
        %v297 = vadd.s32 %v284, 104
        %v298 = vadd.s32 %v284, 112
        %v299 = vadd.s32 %v284, 120
        %v300 = vlaneseq
        %v301 = vand.u32 %v300, 127
        %vm302 = vcmp.eq.s32.totalorder %v284, %v301
        %vm303 = vcmp.eq.s32.totalorder %v285, %v301
        %vm304 = vcmp.eq.s32.totalorder %v286, %v301
        %vm305 = vcmp.eq.s32.totalorder %v287, %v301
        %vm306 = vcmp.eq.s32.totalorder %v288, %v301
        %vm307 = vcmp.eq.s32.totalorder %v289, %v301
        %vm308 = vcmp.eq.s32.totalorder %v290, %v301
        %vm309 = vcmp.eq.s32.totalorder %v291, %v301
        %vm310 = vcmp.eq.s32.totalorder %v292, %v301
        %vm311 = vcmp.eq.s32.totalorder %v293, %v301
        %vm312 = vcmp.eq.s32.totalorder %v294, %v301
        %vm313 = vcmp.eq.s32.totalorder %v295, %v301
        %vm314 = vcmp.eq.s32.totalorder %v296, %v301
        %vm315 = vcmp.eq.s32.totalorder %v297, %v301
        %vm316 = vcmp.eq.s32.totalorder %v298, %v301
        %vm317 = vcmp.eq.s32.totalorder %v299, %v301
        %v318 = vsel %vm302, %v266, 0.0
        %v319 = vsel %vm303, %v267, 0.0
        %v320 = vsel %vm304, %v268, 0.0
        %v321 = vsel %vm305, %v269, 0.0
        %v322 = vsel %vm306, %v270, 0.0
        %v323 = vsel %vm307, %v271, 0.0
        %v324 = vsel %vm308, %v272, 0.0
        %v325 = vsel %vm309, %v273, 0.0
        %v326 = vsel %vm310, %v274, 0.0
        %v327 = vsel %vm311, %v275, 0.0
        %v328 = vsel %vm312, %v276, 0.0
        %v329 = vsel %vm313, %v277, 0.0
        %v330 = vsel %vm314, %v278, 0.0
        %v331 = vsel %vm315, %v279, 0.0
        %v332 = vsel %vm316, %v280, 0.0
        %v333 = vsel %vm317, %v281, 0.0
        %v334 = vadd.f32 %v318, %v319
        %v335 = vadd.f32 %v334, %v320
        %v336 = vadd.f32 %v335, %v321
        %v337 = vadd.f32 %v336, %v322
        %v338 = vadd.f32 %v337, %v323
        %v339 = vadd.f32 %v338, %v324
        %v340 = vadd.f32 %v339, %v325
        %v341 = vadd.f32 %v340, %v326
        %v342 = vadd.f32 %v341, %v327
        %v343 = vadd.f32 %v342, %v328
        %v344 = vadd.f32 %v343, %v329
        %v345 = vadd.f32 %v344, %v330
        %v346 = vadd.f32 %v345, %v331
        %v347 = vadd.f32 %v346, %v332
        %v348 = vadd.f32 %v347, %v333
        %v349 = vrot.slane %v348, 4
        %v350 = vadd.f32 %v348, %v349
        %v351 = vrot.slane %v350, 2
        %v352 = vadd.f32 %v350, %v351
        %v353 = vrot.slane %v352, 1
        %v354 = vadd.f32 %v352, %v353
        %v355 = vsel %vm302, %v265, 0.0
        %vm356 = vcmask 64512
        %v357 = vsel %vm356, %v355, 0.0
        %358 = vadd.xlane.f32.xlu0 %v357
        %v359 = vpop.xlane.xlu0 %358
        %v360 = vmul.f32 %v264, %v354
        %v361 = vmul.f32 %v359, %v360
        %v363 = vlaneseq
        %v364 = vshrl.u32 %v363, 7
        %v365 = vsub.s32 0, %v364
        %v366 = vrot.slane %v282, %v365
        %v368 = vadd.f32 %v361, %v366
        %369 = vst [vmem:[%s263] sm:$0xff] %v368
        %s370 = sand.u32 %s126, 1
        %s371 = scalar_lea.sflag [#allocation4], %s370
        %s372 = sand.u32 %s126, 1
        %s373 = smul.addr %s372, 8
        %s374 = scalar_lea.vmem [#allocation8], %s373
        // Predicated region
        $region49: #{graph_convolution.1} parent=35 // pred_check
          %p375 = pneg %p136
        $region50: #{graph_convolution.1} parent=35 // pred_check_branch
          %377 = sbr.rel (%p375) target = $region52
        $region51: #{graph_convolution.1} parent=35 // pred_region
          %s379 = ssub.s32 128, 128
          %380 = vsyncadd %s371, %s379
          %s381 = smul.addr %s24, 128
          %s382 = scalar_lea.hbm %s4, %s381
          %s384 = sshll.u32 %s374, 4
          %s385 = int_to_ptr.vmem [resolvable:$true] %s384
          %387 = dma.vmem_to_hbm [thread:$0]  %s385, 128, %s382, %s371
        $region52: #{graph_convolution.1} parent=35 // pred_fallthru
          _
      $region36: #{graph_convolution.1} parent=5 // pred_fallthru
        _
      %p388 = scmp.le.s32.totalorder 2, %s19
      // Predicated region
      $region53: #{graph_convolution.1} parent=5 // pred_check
        %p389 = pneg %p388
      $region54: #{graph_convolution.1} parent=5 // pred_check_branch
        %391 = sbr.rel (%p389) target = $region56
      $region55: #{graph_convolution.1} parent=5 // pred_region
        %s392 = ssub.s32 %s19, 2
        // Predicated region
        $region57: #{graph_convolution.1} parent=55 // pred_check
          %p393 = pneg %p142
        $region58: #{graph_convolution.1} parent=55 // pred_check_branch
          %395 = sbr.rel (%p393) target = $region60
        $region59: #{graph_convolution.1} parent=55 // pred_region
          %s396 = sand.u32 %s127, 1
          %s397 = scalar_lea.sflag [#allocation4], %s396
          %s398 = sand.u32 %s127, 1
          %s399 = smul.addr %s398, 8
          %s400 = scalar_lea.vmem [#allocation8], %s399
          %401 = dma.done %s397, 128
        $region60: #{graph_convolution.1} parent=55 // pred_fallthru
          _
      $region56: #{graph_convolution.1} parent=5 // pred_fallthru
        _
    $region6: #{graph_convolution.1} parent=1 // loop_footer
      %s23 = sadd.s32 1, %s19
    $region7: #{graph_convolution.1} parent=1 // loop_footer_branch
      %18 = sbr.rel target = $region3
    $region8: #{graph_convolution.1} parent=1 // loop_exit
      _
    %402 = vsyncpa [#allocation3], 1
    %s403 = scalar_lea.sflag [#allocation3], 1
    %404 = vsyncpa %s403, 1
    %405 = vsyncpa [#allocation6], 1
    %s406 = scalar_lea.sflag [#allocation6], 1
    %407 = vsyncpa %s406, 1
    %408 = vsyncpa [#allocation4], 1
    %s409 = scalar_lea.sflag [#allocation4], 1
    %410 = vsyncpa %s409, 1

</llo_original>
